<compile_context>
chip_gen: v7x
topology: tpu7x:2x2x1
jax: 0.10.0
libtpu: 0.0.40
codegen_flags: <defaults>
</compile_context>

<pallas_src>
import math
import functools

import jax
import jax.numpy as jnp
from jax.experimental import pallas as pl
from jax.experimental.pallas import tpu as pltpu


# ----------------------------------------------------------------------------
# Kernels
# ----------------------------------------------------------------------------
def rnn_step_kernel(xh_ref, w_rnn_ref, w_lin_ref, b_lin_ref, logp_ref, hn_ref):
    """One fused tanh-RNN step + Linear + LogSoftmax, entirely in VMEM.

    xh_ref:    (1, I+H+1)  f32  -- [x | h0 | 1]  (trailing 1 folds the RNN biases)
    w_rnn_ref: (I+H+1, H)  f32  -- [W_ih^T ; W_hh^T ; (b_ih+b_hh)]
    w_lin_ref: (H, P)      f32  -- W_lin^T zero-padded to P=128 lanes
    b_lin_ref: (1, P)      f32  -- b_lin padded with -1e30 (padded logits -> exp()=0)
    logp_ref:  (1, P)      f32  out (lane-dense; real classes in [:output_size])
    hn_ref:    (1, H)      f32  out
    """
    h1 = jnp.tanh(jnp.dot(xh_ref[...], w_rnn_ref[...],
                          preferred_element_type=jnp.float32))
    hn_ref[...] = h1.astype(hn_ref.dtype)

    logits = (jnp.dot(h1, w_lin_ref[...], preferred_element_type=jnp.float32)
              + b_lin_ref[...])
    m = jnp.max(logits, axis=-1, keepdims=True)
    z = logits - m
    lse = jnp.log(jnp.sum(jnp.exp(z), axis=-1, keepdims=True))
    logp_ref[...] = (z - lse).astype(logp_ref.dtype)


def rnn_seq_kernel(xs_ref, h0_ref, wih_ref, whh_ref, brnn_ref, wlin_ref, blin_ref,
                   logp_ref, hn_ref, pre_ref):
    """Whole sequence in one kernel call; weights stay resident in VMEM.

    xs_ref:  (L, I)   one-hot letters of the whole name
    h0_ref:  (1, H)
    wih_ref: (I, H)   = W_ih^T
    whh_ref: (H, H)   = W_hh^T
    brnn_ref:(1, H)   = b_ih + b_hh
    wlin_ref:(H, P)   padded W_lin^T
    blin_ref:(1, P)   padded b_lin
    pre_ref: (L, H)   VMEM scratch for batched input projection
    """
    # Input projection batched over all time steps: one MXU call with M = seq_len.
    pre_ref[...] = (jnp.dot(xs_ref[...], wih_ref[...],
                            preferred_element_type=jnp.float32)
                    + brnn_ref[...])

    seq_len = xs_ref.shape[0]

    def step(t, h):
        return jnp.tanh(pre_ref[pl.ds(t, 1), :]
                        + jnp.dot(h, whh_ref[...],
                                  preferred_element_type=jnp.float32))

    h = jax.lax.fori_loop(0, seq_len, step, h0_ref[...], unroll=True)
    hn_ref[...] = h.astype(hn_ref.dtype)

    logits = (jnp.dot(h, wlin_ref[...], preferred_element_type=jnp.float32)
              + blin_ref[...])
    m = jnp.max(logits, axis=-1, keepdims=True)
    z = logits - m
    lse = jnp.log(jnp.sum(jnp.exp(z), axis=-1, keepdims=True))
    logp_ref[...] = (z - lse).astype(logp_ref.dtype)


# ----------------------------------------------------------------------------
# Parameter preparation (done ONCE, not per forward call)
# ----------------------------------------------------------------------------
def prepare_params(params, lane_pad=128):
    w_ih, w_hh = params["w_ih"], params["w_hh"]
    b_ih, b_hh = params["b_ih"], params["b_hh"]
    w_lin, b_lin = params["w_lin"], params["b_lin"]

    hidden_size, input_size = w_ih.shape
    output_size = w_lin.shape[0]
    out_pad = ((output_size + lane_pad - 1) // lane_pad) * lane_pad

    f32 = jnp.float32
    w_ih_t = w_ih.T.astype(f32)                                   # (I, H)
    w_hh_t = w_hh.T.astype(f32)                                   # (H, H)
    b_rnn = (b_ih + b_hh).astype(f32).reshape(1, hidden_size)     # (1, H)

    # Fused + bias-augmented recurrent weight for the single-step kernel.
    w_rnn_aug = jnp.concatenate([w_ih_t, w_hh_t, b_rnn], axis=0)  # (I+H+1, H)

    # Lane-dense classifier head: zero-pad weight columns, -1e30 pad bias so the
    # padded logits contribute exp(-huge)=0 to the logsumexp.
    w_lin_pad = jnp.zeros((hidden_size, out_pad), f32)
    w_lin_pad = w_lin_pad.at[:, :output_size].set(w_lin.T.astype(f32))
    b_lin_pad = jnp.full((1, out_pad), -1e30, f32)
    b_lin_pad = b_lin_pad.at[0, :output_size].set(b_lin.astype(f32))

    return {
        "input_size": int(input_size),
        "hidden_size": int(hidden_size),
        "output_size": int(output_size),
        "out_pad": int(out_pad),
        "w_ih_t": w_ih_t,
        "w_hh_t": w_hh_t,
        "b_rnn": b_rnn,
        "w_rnn_aug": w_rnn_aug,
        "w_lin_pad": w_lin_pad,
        "b_lin_pad": b_lin_pad,
    }


# ----------------------------------------------------------------------------
# Wrappers
# ----------------------------------------------------------------------------
_VMEM = pl.BlockSpec(memory_space=pltpu.MemorySpace.VMEM)


def rnn_forward(x, hidden, prep):
    """Mirrors RNN.forward(input, hidden): one time step.

    x:      (1, input_size)
    hidden: (num_layers=1, 1, hidden_size)
    returns (log_probs: (1,1,output_size), hn: (1,1,hidden_size))
    """
    H, O, P = prep["hidden_size"], prep["output_size"], prep["out_pad"]
    h0 = hidden[0].astype(jnp.float32)                               # (1, H)
    ones = jnp.ones((x.shape[0], 1), jnp.float32)
    xh = jnp.concatenate([x.astype(jnp.float32), h0, ones], axis=-1)  # (1, I+H+1)

    logp_pad, hn = pl.pallas_call(
        rnn_step_kernel,
        out_shape=(
            jax.ShapeDtypeStruct((1, P), jnp.float32),
            jax.ShapeDtypeStruct((1, H), jnp.float32),
        ),
        in_specs=[_VMEM] * 4,
        out_specs=(_VMEM, _VMEM),
    )(xh, prep["w_rnn_aug"], prep["w_lin_pad"], prep["b_lin_pad"])

    return logp_pad[:, :O].reshape(1, 1, O), hn.reshape(1, 1, H)


def rnn_sequence_forward(xs, hidden, prep):
    """Whole name in one kernel call (equivalent to calling forward() per letter).

    xs:     (seq_len, input_size)
    hidden: (1, 1, hidden_size)
    returns (log_probs of FINAL step: (1,1,output_size), hn: (1,1,hidden_size))
    """
    H, O, P = prep["hidden_size"], prep["output_size"], prep["out_pad"]
    L = xs.shape[0]
    h0 = hidden[0].astype(jnp.float32)

    logp_pad, hn = pl.pallas_call(
        rnn_seq_kernel,
        out_shape=(
            jax.ShapeDtypeStruct((1, P), jnp.float32),
            jax.ShapeDtypeStruct((1, H), jnp.float32),
        ),
        in_specs=[_VMEM] * 7,
        out_specs=(_VMEM, _VMEM),
        scratch_shapes=[pltpu.VMEM((L, H), jnp.float32)],
    )(xs.astype(jnp.float32), h0, prep["w_ih_t"], prep["w_hh_t"],
      prep["b_rnn"], prep["w_lin_pad"], prep["b_lin_pad"])

    return logp_pad[:, :O].reshape(1, 1, O), hn.reshape(1, 1, H)


# ----------------------------------------------------------------------------
# Pure-JAX references (for verification)
# ----------------------------------------------------------------------------
def reference_forward(x, hidden, params):
    h0 = hidden[0]
    pre = (x @ params["w_ih"].T + params["b_ih"]
           + h0 @ params["w_hh"].T + params["b_hh"])
    h1 = jnp.tanh(pre)
    logits = h1 @ params["w_lin"].T + params["b_lin"]
    logp = jax.nn.log_softmax(logits, axis=-1)
    return logp.reshape(1, 1, -1), h1.reshape(1, 1, -1)


def reference_sequence_forward(xs, hidden, params):
    h = hidden[0]
    for t in range(xs.shape[0]):
        h = jnp.tanh(xs[t:t + 1] @ params["w_ih"].T + params["b_ih"]
                     + h @ params["w_hh"].T + params["b_hh"])
    logits = h @ params["w_lin"].T + params["b_lin"]
    logp = jax.nn.log_softmax(logits, axis=-1)
    return logp.reshape(1, 1, -1), h.reshape(1, 1, -1)


def init_params(key, input_size, hidden_size, output_size):
    """Deterministic PyTorch-style uniform(-1/sqrt(H), 1/sqrt(H)) init."""
    ks = jax.random.split(key, 6)
    bound = 1.0 / math.sqrt(hidden_size)
    u = lambda k, shape: jax.random.uniform(k, shape, jnp.float32, -bound, bound)
    return {
        "w_ih": u(ks[0], (hidden_size, input_size)),
        "w_hh": u(ks[1], (hidden_size, hidden_size)),
        "b_ih": u(ks[2], (hidden_size,)),
        "b_hh": u(ks[3], (hidden_size,)),
        "w_lin": u(ks[4], (output_size, hidden_size)),
        "b_lin": u(ks[5], (output_size,)),
    }


if __name__ == "__main__":
    # n_letters = len(string.ascii_letters + " .,;'") = 57; tutorial has 18 categories.
    input_size = 57
    hidden_size = 32
    output_size = 18
    num_layers = 1
    seq_len = 8

    key = jax.random.PRNGKey(0)
    k_param, k_step, k_seq = jax.random.split(key, 3)
    params = init_params(k_param, input_size, hidden_size, output_size)
    prep = prepare_params(params)   # all transposes / fusion / padding done ONCE

    step_fn = jax.jit(functools.partial(rnn_forward, prep=prep))
    seq_fn = jax.jit(functools.partial(rnn_sequence_forward, prep=prep))

    # --- single step: exact RNN.forward(input, hidden) semantics -------------
    letter = jax.random.randint(k_step, (1,), 0, input_size)
    x = jax.nn.one_hot(letter, input_size, dtype=jnp.float32)        # (1, 57)
    hidden = jnp.zeros((num_layers, 1, hidden_size), jnp.float32)    # initHidden()

    logp, hn = step_fn(x, hidden)
    logp, hn = jax.block_until_ready((logp, hn))
    ref_logp, ref_hn = reference_forward(x, hidden, params)
    assert logp.shape == (1, 1, output_size)
    assert hn.shape == (1, 1, hidden_size)
    assert jnp.allclose(logp, ref_logp, atol=1e-5, rtol=1e-5)
    assert jnp.allclose(hn, ref_hn, atol=1e-5, rtol=1e-5)

    # --- whole name (seq_len letters) in a single kernel call -----------------
    letters = jax.random.randint(k_seq, (seq_len,), 0, input_size)
    xs = jax.nn.one_hot(letters, input_size, dtype=jnp.float32)      # (8, 57)
    logp_s, hn_s = seq_fn(xs, hidden)
    logp_s, hn_s = jax.block_until_ready((logp_s, hn_s))
    ref_logp_s, ref_hn_s = reference_sequence_forward(xs, hidden, params)
    assert jnp.allclose(logp_s, ref_logp_s, atol=1e-4, rtol=1e-4)
    assert jnp.allclose(hn_s, ref_hn_s, atol=1e-4, rtol=1e-4)

    print("KERNEL_OK")
</pallas_src>

<mosaic_0001>
module attributes {stable_mosaic.version = 11 : i64} {
  func.func @rnn_step_kernel(%arg0: memref<1x90xf32, #tpu.memory_space<vmem>>, %arg1: memref<90x32xf32, #tpu.memory_space<vmem>>, %arg2: memref<32x128xf32, #tpu.memory_space<vmem>>, %arg3: memref<1x128xf32, #tpu.memory_space<vmem>>, %arg4: memref<1x128xf32, #tpu.memory_space<vmem>>, %arg5: memref<1x32xf32, #tpu.memory_space<vmem>>) attributes {dimension_semantics = [], scalar_prefetch = 0 : i64, scratch_operands = 0 : i64, tpu.core_type = #tpu.core_type<tc>} {
    %c0 = arith.constant 0 : index
    %c0_0 = arith.constant 0 : index
    %0 = vector.load %arg0[%c0, %c0_0] : memref<1x90xf32, #tpu.memory_space<vmem>>, vector<1x90xf32>
    %c0_1 = arith.constant 0 : index
    %c0_2 = arith.constant 0 : index
    %1 = vector.load %arg1[%c0_1, %c0_2] : memref<90x32xf32, #tpu.memory_space<vmem>>, vector<90x32xf32>
    %cst = arith.constant dense<0.000000e+00> : vector<1x32xf32>
    %2 = tpu.matmul %0, %1, %cst {dimension_numbers = #tpu.dot_dimension_numbers<[1], [0], [0], [1], [0, 0, 1, 1], [], []>} : vector<1x90xf32>, vector<90x32xf32>, vector<1x32xf32> -> vector<1x32xf32>
    %3 = math.tanh %2 : vector<1x32xf32>
    %c0_3 = arith.constant 0 : index
    %c0_4 = arith.constant 0 : index
    %4 = vector.load %arg5[%c0_3, %c0_4] : memref<1x32xf32, #tpu.memory_space<vmem>>, vector<1x32xf32>
    tpu.vector_store %arg5[%c0_3, %c0_4], %3 {strides = array<i32>} : memref<1x32xf32, #tpu.memory_space<vmem>>, vector<1x32xf32>,
    %c0_5 = arith.constant 0 : index
    %c0_6 = arith.constant 0 : index
    %5 = vector.load %arg2[%c0_5, %c0_6] : memref<32x128xf32, #tpu.memory_space<vmem>>, vector<32x128xf32>
    %cst_7 = arith.constant dense<0.000000e+00> : vector<1x128xf32>
    %6 = tpu.matmul %3, %5, %cst_7 {dimension_numbers = #tpu.dot_dimension_numbers<[1], [0], [0], [1], [0, 0, 1, 1], [], []>} : vector<1x32xf32>, vector<32x128xf32>, vector<1x128xf32> -> vector<1x128xf32>
    %c0_8 = arith.constant 0 : index
    %c0_9 = arith.constant 0 : index
    %7 = vector.load %arg3[%c0_8, %c0_9] : memref<1x128xf32, #tpu.memory_space<vmem>>, vector<1x128xf32>
    %8 = arith.addf %6, %7 : vector<1x128xf32>
    %cst_10 = arith.constant dense<0xFF800000> : vector<1xf32>
    %9 = vector.multi_reduction <maximumf>, %8, %cst_10 [1] : vector<1x128xf32> to vector<1xf32>
    %10 = vector.shape_cast %9 : vector<1xf32> to vector<1x1xf32>
    %11 = vector.broadcast %10 : vector<1x1xf32> to vector<1x128xf32>
    %12 = arith.subf %8, %11 : vector<1x128xf32>
    %13 = math.exp %12 : vector<1x128xf32>
    %cst_11 = arith.constant dense<0.000000e+00> : vector<1xf32>
    %14 = vector.multi_reduction <add>, %13, %cst_11 [1] : vector<1x128xf32> to vector<1xf32>
    %15 = vector.shape_cast %14 : vector<1xf32> to vector<1x1xf32>
    %16 = math.log %15 : vector<1x1xf32>
    %17 = vector.broadcast %16 : vector<1x1xf32> to vector<1x128xf32>
    %18 = arith.subf %12, %17 : vector<1x128xf32>
    %c0_12 = arith.constant 0 : index
    %c0_13 = arith.constant 0 : index
    %19 = vector.load %arg4[%c0_12, %c0_13] : memref<1x128xf32, #tpu.memory_space<vmem>>, vector<1x128xf32>
    tpu.vector_store %arg4[%c0_12, %c0_13], %18 {strides = array<i32>} : memref<1x128xf32, #tpu.memory_space<vmem>>, vector<1x128xf32>,
    return
  }
}

</mosaic_0001>

<llo_original>
// kernel: rnn_forward.1
$region0: #{rnn_forward.1}
  #allocation0 [shape = 'u32[]', space=smem, size = 0x4, offset = 0x4, fixed_abs, tag = 'smem constant byte address 0x4 - core index']
  #allocation1 [shape = 'u32[144,128]{1,0:T(1,128)}', space=vmem, size = 0x12000, scoped, tag = 'internal scratch']
  %s0 = inlined_call_operand.vmem [shape: f32[1,90], index: 0, kind: input, shape index: {}]
  %s1 = inlined_call_operand.hbm [shape: f32[90,32], index: 1, kind: input, shape index: {}]
  %s2 = inlined_call_operand.hbm [shape: f32[32,128], index: 2, kind: input, shape index: {}]
  %s3 = inlined_call_operand.vmem [shape: f32[1,128], index: 3, kind: input, shape index: {}]
  %s4 = inlined_call_operand.vmem [shape: f32[1,128], index: 4, kind: output, shape index: {0}]
  %s5 = inlined_call_operand.hbm [shape: f32[1,32], index: 5, kind: output, shape index: {1}]
  %6 = xla_tuple %s4, %s5
  %s7 = sld [smem:[#allocation0]]
  $region42: #{rnn_forward.1} parent=0
    _
  %s9 = ssub.s32 1, %s7
  %s10 = scalar_select 0, %s9, %s7
  $region1: #{rnn_forward.1} parent=0
    #allocation2 [shape = 'u8[49152]{0}', space=vmem, size = 0xc000, scoped, tag = 'input window, operand 1, single buffered']
    #allocation3 [shape = 's32[1]{0}', space=sflag, size = 0x4, scoped, tag = 'scoped memory for rnn_forward.1']
    #allocation4 [shape = 's32[1]{0}', space=sflag, size = 0x4, scoped, tag = 'scoped memory for rnn_forward.1']
    #allocation5 [shape = 'u8[16384]{0}', space=vmem, size = 0x4000, scoped, tag = 'input window, operand 2, single buffered']
    #allocation6 [shape = 's32[1]{0}', space=sflag, size = 0x4, scoped, tag = 'scoped memory for rnn_forward.1']
    #allocation7 [shape = 'u8[512]{0}', space=vmem, size = 0x400, scoped, tag = 'output window, operand 1, single buffered']
    %11 = vsyncpa [#allocation3], 0
    %12 = vsyncpa [#allocation6], 0
    %13 = vsyncpa [#allocation4], 0
    // Predicated region
    $region2: #{rnn_forward.1} parent=1 // pred_check
      _
    $region3: #{rnn_forward.1} parent=1 // pred_check_branch
      %15 = sbr.rel (0) target = $region5
    $region4: #{rnn_forward.1} parent=1 // pred_region
      _
    $region5: #{rnn_forward.1} parent=1 // pred_fallthru
      _
    // Predicated region
    $region6: #{rnn_forward.1} parent=1 // pred_check
      _
    $region7: #{rnn_forward.1} parent=1 // pred_check_branch
      %17 = sbr.rel (0) target = $region9
    $region8: #{rnn_forward.1} parent=1 // pred_region
      %s19 = ssub.s32 1536, 1536
      %20 = vsyncadd [#allocation3], %s19
      %s21 = sshll.u32 [#allocation2], 4
      %s22 = int_to_ptr.vmem [resolvable:$true] %s21
      %27 = dma.hbm_to_vmem [thread:$0]  %s1, 1536, %s22, [#allocation3], 128, 128, 8
    $region9: #{rnn_forward.1} parent=1 // pred_fallthru
      _
    // Predicated region
    $region10: #{rnn_forward.1} parent=1 // pred_check
      _
    $region11: #{rnn_forward.1} parent=1 // pred_check_branch
      %29 = sbr.rel (0) target = $region13
    $region12: #{rnn_forward.1} parent=1 // pred_region
      %s31 = ssub.s32 512, 512
      %32 = vsyncadd [#allocation6], %s31
      %s33 = sshll.u32 [#allocation5], 4
      %s34 = int_to_ptr.vmem [resolvable:$true] %s33
      %39 = dma.hbm_to_vmem [thread:$0]  %s2, 512, %s34, [#allocation6], 128, 128, 8
    $region13: #{rnn_forward.1} parent=1 // pred_fallthru
      _
    // Predicated region
    $region14: #{rnn_forward.1} parent=1 // pred_check
      _
    $region15: #{rnn_forward.1} parent=1 // pred_check_branch
      %41 = sbr.rel (0) target = $region17
    $region16: #{rnn_forward.1} parent=1 // pred_region
      _
    $region17: #{rnn_forward.1} parent=1 // pred_fallthru
      _
    // Predicated region
    $region18: #{rnn_forward.1} parent=1 // pred_check
      _
    $region19: #{rnn_forward.1} parent=1 // pred_check_branch
      %43 = sbr.rel (0) target = $region21
    $region20: #{rnn_forward.1} parent=1 // pred_region
      %44 = dma.done [#allocation3], 1536
    $region21: #{rnn_forward.1} parent=1 // pred_fallthru
      _
    // Predicated region
    $region22: #{rnn_forward.1} parent=1 // pred_check
      _
    $region23: #{rnn_forward.1} parent=1 // pred_check_branch
      %46 = sbr.rel (0) target = $region25
    $region24: #{rnn_forward.1} parent=1 // pred_region
      %47 = dma.done [#allocation6], 512
    $region25: #{rnn_forward.1} parent=1 // pred_fallthru
      _
    %v48 = vld [vmem:[%s0] sm:$0x1]
    %v49 = vld [vmem:[#allocation2] sm:$0xff]
    %v50 = vld [vmem:[#allocation2 + $0x8] sm:$0xff]
    %v51 = vld [vmem:[#allocation2 + $0x10] sm:$0xff]
    %v52 = vld [vmem:[#allocation2 + $0x18] sm:$0xff]
    %v53 = vld [vmem:[#allocation2 + $0x20] sm:$0xff]
    %v54 = vld [vmem:[#allocation2 + $0x28] sm:$0xff]
    %v55 = vld [vmem:[#allocation2 + $0x30] sm:$0xff]
    %v56 = vld [vmem:[#allocation2 + $0x38] sm:$0xff]
    %v57 = vld [vmem:[#allocation2 + $0x40] sm:$0xff]
    %v58 = vld [vmem:[#allocation2 + $0x48] sm:$0xff]
    %v59 = vld [vmem:[#allocation2 + $0x50] sm:$0xff]
    %v60 = vld [vmem:[#allocation2 + $0x58] sm:$0x3]
    %vm61 = vcmask 736256
    %v63 = vsel %vm61, %v48, 0
    %vm65 = vcmask 1041408
    %v67 = vsel %vm65, %v60, 0
    %69 = vmatprep.subr.mxu0 0.0
    %70 = vmatpush1.msra.mxu0 %v49
    %71 = vmatprep.subr.mxu0 0.0
    %72 = vmatpush1.msra.mxu0 %v50
    %73 = vmatprep.subr.mxu0 0.0
    %74 = vmatpush1.msra.mxu0 %v51
    %75 = vmatprep.subr.mxu0 0.0
    %76 = vmatpush1.msra.mxu0 %v52
    %77 = vmatprep.subr.mxu0 0.0
    %78 = vmatpush1.msra.mxu0 %v53
    %79 = vmatprep.subr.mxu0 0.0
    %80 = vmatpush1.msra.mxu0 %v54
    %81 = vmatprep.subr.mxu0 0.0
    %82 = vmatpush1.msra.mxu0 %v55
    %83 = vmatprep.subr.mxu0 0.0
    %84 = vmatpush1.msra.mxu0 %v56
    %85 = vmatprep.subr.mxu0 0.0
    %86 = vmatpush1.msra.mxu0 %v57
    %87 = vmatprep.subr.mxu0 0.0
    %88 = vmatpush1.msra.mxu0 %v58
    %89 = vmatprep.subr.mxu0 0.0
    %90 = vmatpush1.msra.mxu0 %v59
    %91 = vmatprep.subr.mxu0 0.0
    %92 = vmatpush1.msra.mxu0 %v67
    %93 = vmatprep.subr.mxu0 0.0
    %94 = vmatpush1.msra.mxu0 0.0
    %95 = vmatprep.subr.mxu0 0.0
    %96 = vmatpush1.msra.mxu0 0.0
    %97 = vmatprep.subr.mxu0 0.0
    %98 = vmatpush1.msra.mxu0 0.0
    %99 = vmatprep.subr.mxu0 0.0
    %100 = vmatpush1.msra.mxu0 0.0
    %101 = vmatprep.subr.mxu0 0.0
    %102 = vmatpush1.msra.mxu0 0.0
    %103 = vmatprep.subr.mxu0 0.0
    %104 = vmatpush1.msra.mxu0 0.0
    %105 = vmatprep.subr.mxu0 0.0
    %106 = vmatpush1.msra.mxu0 0.0
    %107 = vmatprep.subr.mxu0 0.0
    %108 = vmatpush1.msra.mxu0 0.0
    %109 = vmatprep.subr.mxu0 0.0
    %110 = vmatpush1.msra.mxu0 0.0
    %111 = vmatprep.subr.mxu0 0.0
    %112 = vmatpush1.msra.mxu0 0.0
    %113 = vmatprep.subr.mxu0 0.0
    %114 = vmatpush1.msra.mxu0 0.0
    %115 = vmatprep.subr.mxu0 0.0
    %116 = vmatpush1.msra.mxu0 0.0
    %117 = vmatprep.subr.mxu0 0.0
    %118 = vmatpush1.msra.mxu0 0.0
    %119 = vmatprep.subr.mxu0 0.0
    %120 = vmatpush1.msra.mxu0 0.0
    %121 = vmatprep.subr.mxu0 0.0
    %122 = vmatpush1.msra.mxu0 0.0
    %123 = vmatprep.subr.mxu0 0.0
    %124 = vmatpush1.msra.mxu0 0.0
    %125 = vmatprep.subr.mxu0 0.0
    %126 = vmatpush1.msra.mxu0 0.0
    %127 = vmatprep.subr.mxu0 0.0
    %128 = vmatpush1.msra.mxu0 0.0
    %129 = vmatprep.subr.mxu0 0.0
    %130 = vmatpush1.msra.mxu0 0.0
    %131 = vmatprep.subr.mxu0 0.0
    %132 = vmatpush1.msra.mxu0 0.0
    %133 = vmatprep.mubr.f32.mxu0 0.0
    %134 = vmatmul.mubr.f32.gmra.mrb[0].mxu0 %v63
    %v135 = vpop.f32.mrb[0].mxu0
    %v136 = vadd.f32 0.0, %v135
    %v137 = vpop.f32.mrb[0].mxu0
    %138 = vdwg.mxu0
    %v139 = vtanh.pop %v136
    %vm140 = vcmask 253952
    %141 = vst.msk [vmem:[#allocation7] sm:$0x1] %vm140, %v139
    %v142 = vld [vmem:[#allocation5] sm:$0xff]
    %v143 = vld [vmem:[#allocation5 + $0x8] sm:$0xff]
    %v144 = vld [vmem:[#allocation5 + $0x10] sm:$0xff]
    %v145 = vld [vmem:[#allocation5 + $0x18] sm:$0xff]
    %v146 = vld [vmem:[%s3] sm:$0x1]
    %vm147 = vcmask 261120
    %v149 = vsel %vm147, %v139, 0
    %151 = vmatprep.subr.mxu0 0.0
    %152 = vmatpush1.msra.mxu0 %v142
    %153 = vmatprep.subr.mxu0 0.0
    %154 = vmatpush1.msra.mxu0 %v143
    %155 = vmatprep.subr.mxu0 0.0
    %156 = vmatpush1.msra.mxu0 %v144
    %157 = vmatprep.subr.mxu0 0.0
    %158 = vmatpush1.msra.mxu0 %v145
    %159 = vmatprep.subr.mxu0 0.0
    %160 = vmatpush1.msra.mxu0 0.0
    %161 = vmatprep.subr.mxu0 0.0
    %162 = vmatpush1.msra.mxu0 0.0
    %163 = vmatprep.subr.mxu0 0.0
    %164 = vmatpush1.msra.mxu0 0.0
    %165 = vmatprep.subr.mxu0 0.0
    %166 = vmatpush1.msra.mxu0 0.0
    %167 = vmatprep.subr.mxu0 0.0
    %168 = vmatpush1.msra.mxu0 0.0
    %169 = vmatprep.subr.mxu0 0.0
    %170 = vmatpush1.msra.mxu0 0.0
    %171 = vmatprep.subr.mxu0 0.0
    %172 = vmatpush1.msra.mxu0 0.0
    %173 = vmatprep.subr.mxu0 0.0
    %174 = vmatpush1.msra.mxu0 0.0
    %175 = vmatprep.subr.mxu0 0.0
    %176 = vmatpush1.msra.mxu0 0.0
    %177 = vmatprep.subr.mxu0 0.0
    %178 = vmatpush1.msra.mxu0 0.0
    %179 = vmatprep.subr.mxu0 0.0
    %180 = vmatpush1.msra.mxu0 0.0
    %181 = vmatprep.subr.mxu0 0.0
    %182 = vmatpush1.msra.mxu0 0.0
    %183 = vmatprep.subr.mxu0 0.0
    %184 = vmatpush1.msra.mxu0 0.0
    %185 = vmatprep.subr.mxu0 0.0
    %186 = vmatpush1.msra.mxu0 0.0
    %187 = vmatprep.subr.mxu0 0.0
    %188 = vmatpush1.msra.mxu0 0.0
    %189 = vmatprep.subr.mxu0 0.0
    %190 = vmatpush1.msra.mxu0 0.0
    %191 = vmatprep.subr.mxu0 0.0
    %192 = vmatpush1.msra.mxu0 0.0
    %193 = vmatprep.subr.mxu0 0.0
    %194 = vmatpush1.msra.mxu0 0.0
    %195 = vmatprep.subr.mxu0 0.0
    %196 = vmatpush1.msra.mxu0 0.0
    %197 = vmatprep.subr.mxu0 0.0
    %198 = vmatpush1.msra.mxu0 0.0
    %199 = vmatprep.subr.mxu0 0.0
    %200 = vmatpush1.msra.mxu0 0.0
    %201 = vmatprep.subr.mxu0 0.0
    %202 = vmatpush1.msra.mxu0 0.0
    %203 = vmatprep.subr.mxu0 0.0
    %204 = vmatpush1.msra.mxu0 0.0
    %205 = vmatprep.subr.mxu0 0.0
    %206 = vmatpush1.msra.mxu0 0.0
    %207 = vmatprep.subr.mxu0 0.0
    %208 = vmatpush1.msra.mxu0 0.0
    %209 = vmatprep.subr.mxu0 0.0
    %210 = vmatpush1.msra.mxu0 0.0
    %211 = vmatprep.subr.mxu0 0.0
    %212 = vmatpush1.msra.mxu0 0.0
    %213 = vmatprep.subr.mxu0 0.0
    %214 = vmatpush1.msra.mxu0 0.0
    %215 = vmatprep.mubr.f32.mxu0 0.0
    %216 = vmatmul.mubr.f32.gmra.mrb[0].mxu0 %v149
    %v217 = vpop.f32.mrb[0].mxu0
    %v218 = vadd.f32 %v146, %v217
    %v219 = vpop.f32.mrb[0].mxu0
    %220 = vdwg.mxu0
    %vm221 = vcmask 1040384
    %v222 = vsel %vm221, %v218, -inf
    %223 = vmax.xlane.f32.xlu0 %v222
    %v224 = vpop.xlane.xlu0 %223
    %v225 = vsub.f32 %v218, %v224
    %v226 = vmul.f32 %v225, 1.442695
    %v227 = vpow.pop %v226
    %v228 = vsel %vm221, %v227, 0.0
    %229 = vadd.xlane.f32.xlu0 %v228
    %v230 = vpop.xlane.xlu0 %229
    %v231 = vlog2.pop %v230
    %v232 = vmul.f32 %v231, 0.6931472
    %v233 = vsub.f32 %v225, %v232
    %234 = vst [vmem:[%s4] sm:$0x1] %v233
    // Predicated region
    $region26: #{rnn_forward.1} parent=1 // pred_check
      _
    $region27: #{rnn_forward.1} parent=1 // pred_check_branch
      %236 = sbr.rel (0) target = $region29
    $region28: #{rnn_forward.1} parent=1 // pred_region
      _
    $region29: #{rnn_forward.1} parent=1 // pred_fallthru
      _
    // Predicated region
    $region30: #{rnn_forward.1} parent=1 // pred_check
      _
    $region31: #{rnn_forward.1} parent=1 // pred_check_branch
      %238 = sbr.rel (0) target = $region33
    $region32: #{rnn_forward.1} parent=1 // pred_region
      %s240 = ssub.s32 16, 16
      %241 = vsyncadd [#allocation4], %s240
      %s243 = sshll.u32 [#allocation7], 4
      %s244 = int_to_ptr.vmem [resolvable:$true] %s243
      %246 = dma.vmem_to_hbm [thread:$0]  %s244, 16, %s5, [#allocation4]
    $region33: #{rnn_forward.1} parent=1 // pred_fallthru
      _
    // Predicated region
    $region34: #{rnn_forward.1} parent=1 // pred_check
      _
    $region35: #{rnn_forward.1} parent=1 // pred_check_branch
      %248 = sbr.rel (0) target = $region37
    $region36: #{rnn_forward.1} parent=1 // pred_region
      _
    $region37: #{rnn_forward.1} parent=1 // pred_fallthru
      _
    // Predicated region
    $region38: #{rnn_forward.1} parent=1 // pred_check
      _
    $region39: #{rnn_forward.1} parent=1 // pred_check_branch
      %250 = sbr.rel (0) target = $region41
    $region40: #{rnn_forward.1} parent=1 // pred_region
      %251 = dma.done [#allocation4], 16
    $region41: #{rnn_forward.1} parent=1 // pred_fallthru
      _
    %252 = vsyncpa [#allocation3], 1
    %253 = vsyncpa [#allocation6], 1
    %254 = vsyncpa [#allocation4], 1

</llo_original>
